<compile_context>
chip_gen: v5e
topology: v5e:2x2
jax: 0.10.0
libtpu: 0.0.40
codegen_flags: <defaults>
</compile_context>

<pallas_src>
import jax
import jax.numpy as jnp
from jax.experimental import pallas as pl
from jax.experimental.pallas import tpu as pltpu

LANE = 128
SUBLANE = 8


def _round_up(n: int, m: int) -> int:
    return ((n + m - 1) // m) * m


def mlp_kernel(x_ref, w1t_ref, b1_ref, w2t_ref, b2_ref, o_ref):
    # x: (TB, E), w1t: (E, Hp), b1: (1, Hp), w2t: (Hp, C), b2: (1, C)
    # Weights arrive pre-transposed (and hidden-dim zero-padded) so both dots
    # feed the MXU directly; no in-kernel transpose / relayout.
    x = x_ref[...]
    h = jnp.dot(x, w1t_ref[...], preferred_element_type=jnp.float32)
    h = jnp.maximum(h + b1_ref[...].astype(jnp.float32), 0.0)
    out = jnp.dot(h, w2t_ref[...], preferred_element_type=jnp.float32)
    out = out + b2_ref[...].astype(jnp.float32)
    o_ref[...] = out.astype(o_ref.dtype)


def prepare_net_params(w1, b1, w2, b2, dtype=jnp.float32):
    """One-time weight prep (hoisted out of the per-call forward).

    PyTorch nn.Linear convention: w1: (H, E), b1: (H,), w2: (C, H), b2: (C,).
    Returns (w1t, b1p, w2t, b2p) with the hidden dim zero-padded to a
    multiple of 128 so the intermediate activation is lane-dense. Padding is
    exact: padded hidden units get bias 0 -> relu 0 -> multiply zero rows of
    w2t -> contribute 0. The class dim is left unpadded.
    """
    H, E = w1.shape
    C = w2.shape[0]
    Hp = _round_up(H, LANE)

    w1t = jnp.zeros((E, Hp), dtype).at[:, :H].set(w1.T.astype(dtype))
    b1p = jnp.zeros((1, Hp), dtype).at[:, :H].set(b1.reshape(1, H).astype(dtype))
    w2t = jnp.zeros((Hp, C), dtype).at[:H, :].set(w2.T.astype(dtype))
    b2p = b2.reshape(1, C).astype(dtype)
    return w1t, b1p, w2t, b2p


def net_forward(x, params, *, max_block_b=1024, min_pallas_batch=64):
    """Forward of Net using prepared params. x: (B, E) -> (B, C)."""
    w1t, b1p, w2t, b2p = params
    B, E = x.shape
    Hp = w1t.shape[1]
    C = w2t.shape[1]

    # Small-batch fast path: one trivially small tile; XLA's fused dot beats
    # Pallas fixed launch / DMA-setup cost here.
    if B <= min_pallas_batch:
        h = jnp.maximum(x.astype(w1t.dtype) @ w1t + b1p, 0.0)
        return (h @ w2t + b2p).astype(x.dtype)

    # Batch tile: as large as useful (HBM/overhead bound kernel -> big tiles),
    # but keep the grid length >= 2 so v7x's two TensorCores both get work.
    TB = min(max_block_b, _round_up(pl.cdiv(B, 2), SUBLANE))
    grid = (pl.cdiv(B, TB),)  # no jnp.pad of x; Pallas clips the edge block

    return pl.pallas_call(
        mlp_kernel,
        out_shape=jax.ShapeDtypeStruct((B, C), x.dtype),
        grid=grid,
        in_specs=[
            pl.BlockSpec((TB, E), lambda i: (i, 0)),   # activations (streamed)
            pl.BlockSpec((E, Hp), lambda i: (0, 0)),   # W1.T padded (resident)
            pl.BlockSpec((1, Hp), lambda i: (0, 0)),   # b1 padded (resident)
            pl.BlockSpec((Hp, C), lambda i: (0, 0)),   # W2.T padded-rows (resident)
            pl.BlockSpec((1, C), lambda i: (0, 0)),    # b2 (resident)
        ],
        out_specs=pl.BlockSpec((TB, C), lambda i: (i, 0)),
        compiler_params=pltpu.CompilerParams(
            dimension_semantics=("parallel",)
        ),
    )(x, w1t, b1p, w2t, b2p)


def reference_forward(x, w1, b1, w2, b2):
    h = jnp.maximum(x @ w1.T + b1, 0.0)
    return h @ w2.T + b2


if __name__ == "__main__":
    # Hyperparameters implied by the module:
    # params.embedding_dim, params.hidden_dim, params.number_of_class
    embedding_dim = 32
    hidden_dim = 64
    number_of_class = 16

    key = jax.random.PRNGKey(0)
    kx1, kx2, kw1, kb1, kw2, kb2 = jax.random.split(key, 6)

    # Deterministic synthetic parameter init (PyTorch nn.Linear-like uniform).
    lim1 = 1.0 / (embedding_dim ** 0.5)
    w1 = jax.random.uniform(kw1, (hidden_dim, embedding_dim),
                            minval=-lim1, maxval=lim1, dtype=jnp.float32)
    b1 = jax.random.uniform(kb1, (hidden_dim,),
                            minval=-lim1, maxval=lim1, dtype=jnp.float32)
    lim2 = 1.0 / (hidden_dim ** 0.5)
    w2 = jax.random.uniform(kw2, (number_of_class, hidden_dim),
                            minval=-lim2, maxval=lim2, dtype=jnp.float32)
    b2 = jax.random.uniform(kb2, (number_of_class,),
                            minval=-lim2, maxval=lim2, dtype=jnp.float32)

    # One-time weight prep (hoisted out of the forward).
    params = prepare_net_params(w1, b1, w2, b2)

    # 1) Pallas path: batch large enough to exercise the kernel; B is not a
    #    multiple of the tile, so edge-block clipping is covered too.
    batch_large = 200
    x_large = jax.random.normal(kx1, (batch_large, embedding_dim),
                                dtype=jnp.float32)
    out_large = jax.block_until_ready(net_forward(x_large, params))
    ref_large = reference_forward(x_large, w1, b1, w2, b2)
    assert out_large.shape == (batch_large, number_of_class)
    assert jnp.allclose(out_large, ref_large, atol=1e-5, rtol=1e-5)

    # 2) Small-batch fast path (the module's typical tiny test size).
    batch_small = 8
    x_small = jax.random.normal(kx2, (batch_small, embedding_dim),
                                dtype=jnp.float32)
    out_small = jax.block_until_ready(net_forward(x_small, params))
    ref_small = reference_forward(x_small, w1, b1, w2, b2)
    assert out_small.shape == (batch_small, number_of_class)
    assert jnp.allclose(out_small, ref_small, atol=1e-5, rtol=1e-5)

    print("KERNEL_OK")
</pallas_src>

<mosaic_0001>
module attributes {stable_mosaic.version = 11 : i64} {
  func.func @mlp_kernel(%arg0: i32, %arg1: memref<104x32xf32, #tpu.memory_space<vmem>>, %arg2: memref<32x128xf32, #tpu.memory_space<vmem>>, %arg3: memref<1x128xf32, #tpu.memory_space<vmem>>, %arg4: memref<128x16xf32, #tpu.memory_space<vmem>>, %arg5: memref<1x16xf32, #tpu.memory_space<vmem>>, %arg6: memref<104x16xf32, #tpu.memory_space<vmem>>) attributes {dimension_semantics = [#tpu.dimension_semantics<parallel>], iteration_bounds = array<i64: 2>, scalar_prefetch = 0 : i64, scratch_operands = 0 : i64, tpu.core_type = #tpu.core_type<tc>, window_params = [{transform_indices = @transform_0, window_bounds = array<i64: 104, 32>}, {pipeline_mode = #tpu.pipeline_mode<synchronous>, transform_indices = @transform_1, window_bounds = array<i64: 32, 128>}, {pipeline_mode = #tpu.pipeline_mode<synchronous>, transform_indices = @transform_2, window_bounds = array<i64: 1, 128>}, {pipeline_mode = #tpu.pipeline_mode<synchronous>, transform_indices = @transform_3, window_bounds = array<i64: 128, 16>}, {pipeline_mode = #tpu.pipeline_mode<synchronous>, transform_indices = @transform_4, window_bounds = array<i64: 1, 16>}, {transform_indices = @transform_5, window_bounds = array<i64: 104, 16>}]} {
    %c0 = arith.constant 0 : index
    %c0_0 = arith.constant 0 : index
    %0 = vector.load %arg1[%c0, %c0_0] : memref<104x32xf32, #tpu.memory_space<vmem>>, vector<104x32xf32>
    %c0_1 = arith.constant 0 : index
    %c0_2 = arith.constant 0 : index
    %1 = vector.load %arg2[%c0_1, %c0_2] : memref<32x128xf32, #tpu.memory_space<vmem>>, vector<32x128xf32>
    %cst = arith.constant dense<0.000000e+00> : vector<104x128xf32>
    %2 = tpu.matmul %0, %1, %cst {dimension_numbers = #tpu.dot_dimension_numbers<[1], [0], [0], [1], [0, 0, 1, 1], [], []>} : vector<104x32xf32>, vector<32x128xf32>, vector<104x128xf32> -> vector<104x128xf32>
    %c0_3 = arith.constant 0 : index
    %c0_4 = arith.constant 0 : index
    %3 = vector.load %arg3[%c0_3, %c0_4] : memref<1x128xf32, #tpu.memory_space<vmem>>, vector<1x128xf32>
    %4 = vector.broadcast %3 : vector<1x128xf32> to vector<104x128xf32>
    %5 = arith.addf %2, %4 : vector<104x128xf32>
    %cst_5 = arith.constant 0.000000e+00 : f32
    %6 = vector.broadcast %cst_5 : f32 to vector<104x128xf32>
    %7 = arith.maximumf %5, %6 : vector<104x128xf32>
    %c0_6 = arith.constant 0 : index
    %c0_7 = arith.constant 0 : index
    %8 = vector.load %arg4[%c0_6, %c0_7] : memref<128x16xf32, #tpu.memory_space<vmem>>, vector<128x16xf32>
    %cst_8 = arith.constant dense<0.000000e+00> : vector<104x16xf32>
    %9 = tpu.matmul %7, %8, %cst_8 {dimension_numbers = #tpu.dot_dimension_numbers<[1], [0], [0], [1], [0, 0, 1, 1], [], []>} : vector<104x128xf32>, vector<128x16xf32>, vector<104x16xf32> -> vector<104x16xf32>
    %c0_9 = arith.constant 0 : index
    %c0_10 = arith.constant 0 : index
    %10 = vector.load %arg5[%c0_9, %c0_10] : memref<1x16xf32, #tpu.memory_space<vmem>>, vector<1x16xf32>
    %11 = vector.broadcast %10 : vector<1x16xf32> to vector<104x16xf32>
    %12 = arith.addf %9, %11 : vector<104x16xf32>
    %c0_11 = arith.constant 0 : index
    %c0_12 = arith.constant 0 : index
    %13 = vector.load %arg6[%c0_11, %c0_12] : memref<104x16xf32, #tpu.memory_space<vmem>>, vector<104x16xf32>
    tpu.vector_store %arg6[%c0_11, %c0_12], %12 {strides = array<i32>} : memref<104x16xf32, #tpu.memory_space<vmem>>, vector<104x16xf32>,
    return
  }
  func.func @transform_0(%arg0: i32) -> (i32, i32) {
    %c0_i32 = arith.constant 0 : i32
    %c0_i32_0 = arith.constant 0 : i32
    return %arg0, %c0_i32 : i32, i32
  }
  func.func @transform_1(%arg0: i32) -> (i32, i32) {
    %c0_i32 = arith.constant 0 : i32
    %c0_i32_0 = arith.constant 0 : i32
    %c0_i32_1 = arith.constant 0 : i32
    return %c0_i32, %c0_i32_0 : i32, i32
  }
  func.func @transform_2(%arg0: i32) -> (i32, i32) {
    %c0_i32 = arith.constant 0 : i32
    %c0_i32_0 = arith.constant 0 : i32
    %c0_i32_1 = arith.constant 0 : i32
    return %c0_i32, %c0_i32_0 : i32, i32
  }
  func.func @transform_3(%arg0: i32) -> (i32, i32) {
    %c0_i32 = arith.constant 0 : i32
    %c0_i32_0 = arith.constant 0 : i32
    %c0_i32_1 = arith.constant 0 : i32
    return %c0_i32, %c0_i32_0 : i32, i32
  }
  func.func @transform_4(%arg0: i32) -> (i32, i32) {
    %c0_i32 = arith.constant 0 : i32
    %c0_i32_0 = arith.constant 0 : i32
    %c0_i32_1 = arith.constant 0 : i32
    return %c0_i32, %c0_i32_0 : i32, i32
  }
  func.func @transform_5(%arg0: i32) -> (i32, i32) {
    %c0_i32 = arith.constant 0 : i32
    %c0_i32_0 = arith.constant 0 : i32
    return %arg0, %c0_i32 : i32, i32
  }
}

</mosaic_0001>

<llo_original>
// kernel: tpu_custom_call.1
$region0: #{tpu_custom_call.1}
  #allocation0 [shape = 'u32[]', space=smem, size = 0x4, offset = 0x4, fixed_abs, tag = 'smem constant byte address 0x4 - core index']
  #allocation1 [shape = 'u32[72,128]{1,0:T(1,128)}', space=vmem, size = 0x9000, scoped, tag = 'internal scratch']
  %s0 = inlined_call_operand.vmem [shape: f32[200,32], index: 0, kind: input, shape index: {}]
  %s1 = inlined_call_operand.vmem [shape: f32[32,128], index: 1, kind: input, shape index: {}]
  %s2 = inlined_call_operand.vmem [shape: f32[1,128], index: 2, kind: input, shape index: {}]
  %s3 = inlined_call_operand.vmem [shape: f32[128,16], index: 3, kind: input, shape index: {}]
  %s4 = inlined_call_operand.vmem [shape: f32[1,16], index: 4, kind: input, shape index: {}]
  %s5 = inlined_call_operand.vmem [shape: f32[200,16], index: 5, kind: output, shape index: {}]
  %s6 = sld [smem:[#allocation0]]
  $region101: #{tpu_custom_call.1} parent=0
    _
  %s8 = ssub.s32 1, %s6
  %s9 = scalar_select 0, %s8, %s6
  $region1: #{tpu_custom_call.1} parent=0
    #allocation2 [shape = 'u8[106496]{0}', space=vmem, size = 0x1a000, scoped, tag = 'output window, operand 0']
    loop: start=0, step=1, limit=4
    $region2: #{tpu_custom_call.1} parent=1 // loop_pre_header
      _
    $region3: #{tpu_custom_call.1} parent=1 // loop_header
      %s11 = sphi 0, %s15
      %p12 = scmp.ge.s32.totalorder %s11, 4
      %s21 = sphi 0, %s23
      %s24 = sphi 0, %s21
      %s25 = sphi 0, %s24
      %s41 = sphi 0, %s25
      %s45 = sphi 0, %s45
      %s47 = sphi 0, %s45
      %s48 = sphi 0, %s47
      %s62 = sphi 0, %s48
      %s66 = sphi 0, %s66
      %s68 = sphi 0, %s66
      %s69 = sphi 0, %s68
      %s83 = sphi 0, %s69
      %s87 = sphi 0, %s87
      %s89 = sphi 0, %s87
      %s90 = sphi 0, %s89
      %s104 = sphi 0, %s90
      %s108 = sphi 0, %s108
      %s110 = sphi 0, %s108
      %s111 = sphi 0, %s110
      %s125 = sphi 0, %s111
      %s131 = sphi 0, %s133
      %s134 = sphi 0, %s131
      %s135 = sphi 0, %s134
      %s151 = sphi 0, %s135
    $region4: #{tpu_custom_call.1} parent=1 // loop_header_branch
      %14 = sbr.rel (%p12) target = $region8
    $region5: #{tpu_custom_call.1} parent=1 // loop_body
      %s16 = ssub.s32 %s11, 1
      %s17 = ssub.s32 %s11, 2
      %s18 = sadd.s32 %s11, 1
      %s19 = ssub.s32 %s11, %s18
      %p20 = scmp.eq.s32.totalorder %s19, 0
      %s22 = sadd.s32 %s21, 1
      %s23 = scalar_select %p20, %s21, %s22
      %p26 = pneg %p20
      %p27 = scmp.eq.s32.totalorder %s11, 1
      %p28 = por %p26, %p27
      %p29 = scmp.ne.s32.totalorder %s21, %s24
      %p30 = scmp.eq.s32.totalorder %s11, 0
      %p31 = por %p29, %p30
      %p32 = scmp.ne.s32.totalorder %s21, %s24
      %p33 = scmp.eq.s32.totalorder %s16, 1
      %p34 = por %p32, %p33
      %p35 = scmp.ne.s32.totalorder %s24, %s25
      %p36 = scmp.eq.s32.totalorder %s16, 0
      %p37 = por %p35, %p36
      %p38 = scmp.ne.s32.totalorder %s24, %s25
      %p39 = scmp.eq.s32.totalorder %s17, 1
      %p40 = por %p38, %p39
      %p42 = scmp.ne.s32.totalorder %s25, %s41
      %p43 = scmp.eq.s32.totalorder %s17, 0
      %p44 = por %p42, %p43
      %s46 = sadd.s32 %s45, 1
      %p49 = scmp.eq.s32.totalorder %s11, 1
      %p50 = scmp.ne.s32.totalorder %s45, %s47
      %p51 = scmp.eq.s32.totalorder %s11, 0
      %p52 = por %p50, %p51
      %p53 = scmp.ne.s32.totalorder %s45, %s47
      %p54 = scmp.eq.s32.totalorder %s16, 1
      %p55 = por %p53, %p54
      %p56 = scmp.ne.s32.totalorder %s47, %s48
      %p57 = scmp.eq.s32.totalorder %s16, 0
      %p58 = por %p56, %p57
      %p59 = scmp.ne.s32.totalorder %s47, %s48
      %p60 = scmp.eq.s32.totalorder %s17, 1
      %p61 = por %p59, %p60
      %p63 = scmp.ne.s32.totalorder %s48, %s62
      %p64 = scmp.eq.s32.totalorder %s17, 0
      %p65 = por %p63, %p64
      %s67 = sadd.s32 %s66, 1
      %p70 = scmp.eq.s32.totalorder %s11, 1
      %p71 = scmp.ne.s32.totalorder %s66, %s68
      %p72 = scmp.eq.s32.totalorder %s11, 0
      %p73 = por %p71, %p72
      %p74 = scmp.ne.s32.totalorder %s66, %s68
      %p75 = scmp.eq.s32.totalorder %s16, 1
      %p76 = por %p74, %p75
      %p77 = scmp.ne.s32.totalorder %s68, %s69
      %p78 = scmp.eq.s32.totalorder %s16, 0
      %p79 = por %p77, %p78
      %p80 = scmp.ne.s32.totalorder %s68, %s69
      %p81 = scmp.eq.s32.totalorder %s17, 1
      %p82 = por %p80, %p81
      %p84 = scmp.ne.s32.totalorder %s69, %s83
      %p85 = scmp.eq.s32.totalorder %s17, 0
      %p86 = por %p84, %p85
      %s88 = sadd.s32 %s87, 1
      %p91 = scmp.eq.s32.totalorder %s11, 1
      %p92 = scmp.ne.s32.totalorder %s87, %s89
      %p93 = scmp.eq.s32.totalorder %s11, 0
      %p94 = por %p92, %p93
      %p95 = scmp.ne.s32.totalorder %s87, %s89
      %p96 = scmp.eq.s32.totalorder %s16, 1
      %p97 = por %p95, %p96
      %p98 = scmp.ne.s32.totalorder %s89, %s90
      %p99 = scmp.eq.s32.totalorder %s16, 0
      %p100 = por %p98, %p99
      %p101 = scmp.ne.s32.totalorder %s89, %s90
      %p102 = scmp.eq.s32.totalorder %s17, 1
      %p103 = por %p101, %p102
      %p105 = scmp.ne.s32.totalorder %s90, %s104
      %p106 = scmp.eq.s32.totalorder %s17, 0
      %p107 = por %p105, %p106
      %s109 = sadd.s32 %s108, 1
      %p112 = scmp.eq.s32.totalorder %s11, 1
      %p113 = scmp.ne.s32.totalorder %s108, %s110
      %p114 = scmp.eq.s32.totalorder %s11, 0
      %p115 = por %p113, %p114
      %p116 = scmp.ne.s32.totalorder %s108, %s110
      %p117 = scmp.eq.s32.totalorder %s16, 1
      %p118 = por %p116, %p117
      %p119 = scmp.ne.s32.totalorder %s110, %s111
      %p120 = scmp.eq.s32.totalorder %s16, 0
      %p121 = por %p119, %p120
      %p122 = scmp.ne.s32.totalorder %s110, %s111
      %p123 = scmp.eq.s32.totalorder %s17, 1
      %p124 = por %p122, %p123
      %p126 = scmp.ne.s32.totalorder %s111, %s125
      %p127 = scmp.eq.s32.totalorder %s17, 0
      %p128 = por %p126, %p127
      %s129 = ssub.s32 %s11, %s18
      %p130 = scmp.eq.s32.totalorder %s129, 0
      %s132 = sadd.s32 %s131, 1
      %s133 = scalar_select %p130, %s131, %s132
      %p136 = pneg %p130
      %p137 = scmp.eq.s32.totalorder %s11, 1
      %p138 = por %p136, %p137
      %p139 = scmp.ne.s32.totalorder %s131, %s134
      %p140 = scmp.eq.s32.totalorder %s11, 0
      %p141 = por %p139, %p140
      %p142 = scmp.ne.s32.totalorder %s131, %s134
      %p143 = scmp.eq.s32.totalorder %s16, 1
      %p144 = por %p142, %p143
      %p145 = scmp.ne.s32.totalorder %s134, %s135
      %p146 = scmp.eq.s32.totalorder %s16, 0
      %p147 = por %p145, %p146
      %p148 = scmp.ne.s32.totalorder %s134, %s135
      %p149 = scmp.eq.s32.totalorder %s17, 1
      %p150 = por %p148, %p149
      %p152 = scmp.ne.s32.totalorder %s135, %s151
      %p153 = scmp.eq.s32.totalorder %s17, 0
      %p154 = por %p152, %p153
      %p155 = scmp.le.s32.totalorder 1, %s11
      %p156 = scmp.lt.s32.totalorder %s11, 3
      %p157 = pnand %p155, %p156
      %p158 = pneg %p157
      // Predicated region
      $region9: #{tpu_custom_call.1} parent=5 // pred_check
        _
      $region10: #{tpu_custom_call.1} parent=5 // pred_check_branch
        %160 = sbr.rel (%p157) target = $region12
      $region11: #{tpu_custom_call.1} parent=5 // pred_region
        %s161 = ssub.s32 %s11, 1
        // Predicated region
        $region13: #{tpu_custom_call.1} parent=11 // pred_check
          %p162 = pneg %p58
        $region14: #{tpu_custom_call.1} parent=11 // pred_check_branch
          %164 = sbr.rel (%p162) target = $region16
        $region15: #{tpu_custom_call.1} parent=11 // pred_region
          _
        $region16: #{tpu_custom_call.1} parent=11 // pred_fallthru
          _
        // Predicated region
        $region17: #{tpu_custom_call.1} parent=11 // pred_check
          %p165 = pneg %p79
        $region18: #{tpu_custom_call.1} parent=11 // pred_check_branch
          %167 = sbr.rel (%p165) target = $region20
        $region19: #{tpu_custom_call.1} parent=11 // pred_region
          _
        $region20: #{tpu_custom_call.1} parent=11 // pred_fallthru
          _
        // Predicated region
        $region21: #{tpu_custom_call.1} parent=11 // pred_check
          %p168 = pneg %p100
        $region22: #{tpu_custom_call.1} parent=11 // pred_check_branch
          %170 = sbr.rel (%p168) target = $region24
        $region23: #{tpu_custom_call.1} parent=11 // pred_region
          _
        $region24: #{tpu_custom_call.1} parent=11 // pred_fallthru
          _
        // Predicated region
        $region25: #{tpu_custom_call.1} parent=11 // pred_check
          %p171 = pneg %p121
        $region26: #{tpu_custom_call.1} parent=11 // pred_check_branch
          %173 = sbr.rel (%p171) target = $region28
        $region27: #{tpu_custom_call.1} parent=11 // pred_region
          _
        $region28: #{tpu_custom_call.1} parent=11 // pred_fallthru
          _
      $region12: #{tpu_custom_call.1} parent=5 // pred_fallthru
        _
      %p174 = scmp.lt.s32.totalorder %s11, 2
      // Predicated region
      $region29: #{tpu_custom_call.1} parent=5 // pred_check
        %p175 = pneg %p174
      $region30: #{tpu_custom_call.1} parent=5 // pred_check_branch
        %177 = sbr.rel (%p175) target = $region32
      $region31: #{tpu_custom_call.1} parent=5 // pred_region
        // Predicated region
        $region33: #{tpu_custom_call.1} parent=31 // pred_check
          %p178 = pneg %p31
        $region34: #{tpu_custom_call.1} parent=31 // pred_check_branch
          %180 = sbr.rel (%p178) target = $region36
        $region35: #{tpu_custom_call.1} parent=31 // pred_region
          %s181 = smul.u32 13, %s11
          %s182 = ssub.s32 25, %s181
          %p183 = scmp.lt.s32.totalorder %s182, 13
          %s184 = scalar_select %p183, %s182, 13
          %s185 = smul.u32 8, %s184
          %p186 = scmp.lt.s32.totalorder %s181, 24
          %s187 = scalar_select %p186, %s181, 24
          %s188 = smul.addr %s187, 8
          %s189 = scalar_lea.vmem %s0, %s188
          %s190 = smul.u32 13, %s11
          %s191 = ssub.s32 25, %s190
          %p192 = scmp.lt.s32.totalorder %s191, 13
          %s193 = scalar_select %p192, %s191, 13
          %s194 = smul.u32 8, %s193
        $region36: #{tpu_custom_call.1} parent=31 // pred_fallthru
          _
      $region32: #{tpu_custom_call.1} parent=5 // pred_fallthru
        _
      %p195 = scmp.le.s32.totalorder 1, %s11
      %p196 = scmp.lt.s32.totalorder %s11, 3
      %p197 = pnand %p195, %p196
      %p198 = pneg %p197
      // Predicated region
      $region37: #{tpu_custom_call.1} parent=5 // pred_check
        _
      $region38: #{tpu_custom_call.1} parent=5 // pred_check_branch
        %200 = sbr.rel (%p197) target = $region40
      $region39: #{tpu_custom_call.1} parent=5 // pred_region
        %s201 = ssub.s32 %s11, 1
        %s202 = smul.u32 13, %s16
        %s203 = ssub.s32 25, %s202
        %p204 = scmp.lt.s32.totalorder %s203, 13
        %s205 = scalar_select %p204, %s203, 13
        %s206 = smul.u32 8, %s205
        %p207 = scmp.lt.s32.totalorder %s202, 24
        %s208 = scalar_select %p207, %s202, 24
        %s209 = smul.addr %s208, 8
        %s210 = scalar_lea.vmem %s0, %s209
        %p211 = pneg %p37
        %p212 = pneg %p34
        %p213 = pneg %p58
        %p214 = pneg %p55
        %p215 = pneg %p79
        %p216 = pneg %p76
        %p217 = pneg %p100
        %p218 = pneg %p97
        %p219 = pneg %p121
        %p220 = pneg %p118
        %p221 = pneg %p147
        %p222 = pneg %p144
        %s223 = sand.u32 %s134, 1
        %s224 = sand.u32 %s134, 1
        %s225 = smul.addr %s224, 104
        %s226 = scalar_lea.vmem [#allocation2], %s225
        %s227 = smul.u32 13, %s16
        %s228 = ssub.s32 25, %s227
        %p229 = scmp.lt.s32.totalorder %s228, 13
        %s230 = scalar_select %p229, %s228, 13
        %s231 = smul.u32 8, %s230
        %p232 = scmp.lt.s32.totalorder %s227, 24
        %s233 = scalar_select %p232, %s227, 24
        %s234 = smul.addr %s233, 8
        %s235 = scalar_lea.vmem %s0, %s234
        %s236 = smul.u32 13, %s16
        %s237 = ssub.s32 25, %s236
        %p238 = scmp.lt.s32.totalorder %s237, 13
        %s239 = scalar_select %p238, %s237, 13
        %s240 = smul.u32 8, %s239
        %s241 = smul.u32 13, %s16
        %s242 = ssub.s32 25, %s241
        %p243 = scmp.lt.s32.totalorder %s242, 13
        %s244 = scalar_select %p243, %s242, 13
        %s245 = smul.u32 8, %s244
        %v246 = vld [vmem:[%s235] sm:$0xff]
        %v247 = vld [vmem:[%s235 + $0x8] sm:$0xff]
        %v248 = vld [vmem:[%s235 + $0x10] sm:$0xff]
        %v249 = vld [vmem:[%s235 + $0x18] sm:$0xff]
        %v250 = vld [vmem:[%s235 + $0x20] sm:$0xff]
        %v251 = vld [vmem:[%s235 + $0x28] sm:$0xff]
        %v252 = vld [vmem:[%s235 + $0x30] sm:$0xff]
        %v253 = vld [vmem:[%s235 + $0x38] sm:$0xff]
        %v254 = vld [vmem:[%s235 + $0x40] sm:$0xff]
        %v255 = vld [vmem:[%s235 + $0x48] sm:$0xff]
        %v256 = vld [vmem:[%s235 + $0x50] sm:$0xff]
        %v257 = vld [vmem:[%s235 + $0x58] sm:$0xff]
        %v258 = vld [vmem:[%s235 + $0x60] sm:$0xff]
        %v259 = vld [vmem:[%s1] sm:$0xff]
        %v260 = vld [vmem:[%s1 + $0x8] sm:$0xff]
        %v261 = vld [vmem:[%s1 + $0x10] sm:$0xff]
        %v262 = vld [vmem:[%s1 + $0x18] sm:$0xff]
        %v263 = vld [vmem:[%s2] sm:$0x1]
        %v265 = vperm.slane %v263, 0
        %vm267 = vcmask 261120
        %v269 = vsel %vm267, %v246, 0
        %v272 = vsel %vm267, %v247, 0
        %v275 = vsel %vm267, %v248, 0
        %v278 = vsel %vm267, %v249, 0
        %v281 = vsel %vm267, %v250, 0
        %v284 = vsel %vm267, %v251, 0
        %v287 = vsel %vm267, %v252, 0
        %v290 = vsel %vm267, %v253, 0
        %v293 = vsel %vm267, %v254, 0
        %v296 = vsel %vm267, %v255, 0
        %v299 = vsel %vm267, %v256, 0
        %v302 = vsel %vm267, %v257, 0
        %v305 = vsel %vm267, %v258, 0
        %307 = vmatpush.msra.mxu0 0.0
        %308 = vmatpush.msra.mxu0 0.0
        %309 = vmatpush.msra.mxu0 0.0
        %310 = vmatpush.msra.mxu0 0.0
        %311 = vmatpush.msra.mxu0 0.0
        %312 = vmatpush.msra.mxu0 0.0
        %313 = vmatpush.msra.mxu0 0.0
        %314 = vmatpush.msra.mxu0 0.0
        %315 = vmatpush.msra.mxu0 0.0
        %316 = vmatpush.msra.mxu0 0.0
        %317 = vmatpush.msra.mxu0 0.0
        %318 = vmatpush.msra.mxu0 0.0
        %319 = vmatpush.msra.mxu0 %v262
        %320 = vmatpush.msra.mxu0 %v261
        %321 = vmatpush.msra.mxu0 %v260
        %322 = vmatpush.msra.mxu0 %v259
        %323 = vmatmul.f32.gmra.mxu0 %v269
        %v324 = vpop.f32.mrf.mxu0
        %v325 = vadd.f32 %v265, %v324
        %326 = vmatmul.f32.gmra.mxu0 %v272
        %v327 = vpop.f32.mrf.mxu0
        %v328 = vadd.f32 %v265, %v327
        %329 = vmatmul.f32.gmra.mxu0 %v275
        %v330 = vpop.f32.mrf.mxu0
        %v331 = vadd.f32 %v265, %v330
        %332 = vmatmul.f32.gmra.mxu0 %v278
        %v333 = vpop.f32.mrf.mxu0
        %v334 = vadd.f32 %v265, %v333
        %335 = vmatmul.f32.gmra.mxu0 %v281
        %v336 = vpop.f32.mrf.mxu0
        %v337 = vadd.f32 %v265, %v336
        %338 = vmatmul.f32.gmra.mxu0 %v284
        %v339 = vpop.f32.mrf.mxu0
        %v340 = vadd.f32 %v265, %v339
        %341 = vmatmul.f32.gmra.mxu0 %v287
        %v342 = vpop.f32.mrf.mxu0
        %v343 = vadd.f32 %v265, %v342
        %344 = vmatmul.f32.gmra.mxu0 %v290
        %v345 = vpop.f32.mrf.mxu0
        %v346 = vadd.f32 %v265, %v345
        %347 = vmatmul.f32.gmra.mxu0 %v293
        %v348 = vpop.f32.mrf.mxu0
        %v349 = vadd.f32 %v265, %v348
        %350 = vmatmul.f32.gmra.mxu0 %v296
        %v351 = vpop.f32.mrf.mxu0
        %v352 = vadd.f32 %v265, %v351
        %353 = vmatmul.f32.gmra.mxu0 %v299
        %v354 = vpop.f32.mrf.mxu0
        %v355 = vadd.f32 %v265, %v354
        %356 = vmatmul.f32.gmra.mxu0 %v302
        %v357 = vpop.f32.mrf.mxu0
        %v358 = vadd.f32 %v265, %v357
        %359 = vmatmul.f32.gmra.mxu0 %v305
        %v360 = vpop.f32.mrf.mxu0
        %v361 = vadd.f32 %v265, %v360
        %362 = vdwg.mxu0
        %v363 = vmax.f32 %v325, 0.0
        %v364 = vmax.f32 %v328, 0.0
        %v365 = vmax.f32 %v331, 0.0
        %v366 = vmax.f32 %v334, 0.0
        %v367 = vmax.f32 %v337, 0.0
        %v368 = vmax.f32 %v340, 0.0
        %v369 = vmax.f32 %v343, 0.0
        %v370 = vmax.f32 %v346, 0.0
        %v371 = vmax.f32 %v349, 0.0
        %v372 = vmax.f32 %v352, 0.0
        %v373 = vmax.f32 %v355, 0.0
        %v374 = vmax.f32 %v358, 0.0
        %v375 = vmax.f32 %v361, 0.0
        %v376 = vld [vmem:[%s3] sm:$0xff]
        %v377 = vld [vmem:[%s3 + $0x8] sm:$0xff]
        %v378 = vld [vmem:[%s3 + $0x10] sm:$0xff]
        %v379 = vld [vmem:[%s3 + $0x18] sm:$0xff]
        %v380 = vld [vmem:[%s3 + $0x20] sm:$0xff]
        %v381 = vld [vmem:[%s3 + $0x28] sm:$0xff]
        %v382 = vld [vmem:[%s3 + $0x30] sm:$0xff]
        %v383 = vld [vmem:[%s3 + $0x38] sm:$0xff]
        %v384 = vld [vmem:[%s3 + $0x40] sm:$0xff]
        %v385 = vld [vmem:[%s3 + $0x48] sm:$0xff]
        %v386 = vld [vmem:[%s3 + $0x50] sm:$0xff]
        %v387 = vld [vmem:[%s3 + $0x58] sm:$0xff]
        %v388 = vld [vmem:[%s3 + $0x60] sm:$0xff]
        %v389 = vld [vmem:[%s3 + $0x68] sm:$0xff]
        %v390 = vld [vmem:[%s3 + $0x70] sm:$0xff]
        %v391 = vld [vmem:[%s3 + $0x78] sm:$0xff]
        %v392 = vld [vmem:[%s4] sm:$0x1]
        %v394 = vperm.slane %v392, 0
        %396 = vmatpush.msra.mxu0 %v391
        %397 = vmatpush.msra.mxu0 %v390
        %398 = vmatpush.msra.mxu0 %v389
        %399 = vmatpush.msra.mxu0 %v388
        %400 = vmatpush.msra.mxu0 %v387
        %401 = vmatpush.msra.mxu0 %v386
        %402 = vmatpush.msra.mxu0 %v385
        %403 = vmatpush.msra.mxu0 %v384
        %404 = vmatpush.msra.mxu0 %v383
        %405 = vmatpush.msra.mxu0 %v382
        %406 = vmatpush.msra.mxu0 %v381
        %407 = vmatpush.msra.mxu0 %v380
        %408 = vmatpush.msra.mxu0 %v379
        %409 = vmatpush.msra.mxu0 %v378
        %410 = vmatpush.msra.mxu0 %v377
        %411 = vmatpush.msra.mxu0 %v376
        %412 = vmatmul.f32.gmra.mxu0 %v363
        %v413 = vpop.f32.mrf.mxu0
        %v414 = vadd.f32 %v394, %v413
        %415 = vmatmul.f32.gmra.mxu0 %v364
        %v416 = vpop.f32.mrf.mxu0
        %v417 = vadd.f32 %v394, %v416
        %418 = vmatmul.f32.gmra.mxu0 %v365
        %v419 = vpop.f32.mrf.mxu0
        %v420 = vadd.f32 %v394, %v419
        %421 = vmatmul.f32.gmra.mxu0 %v366
        %v422 = vpop.f32.mrf.mxu0
        %v423 = vadd.f32 %v394, %v422
        %424 = vmatmul.f32.gmra.mxu0 %v367
        %v425 = vpop.f32.mrf.mxu0
        %v426 = vadd.f32 %v394, %v425
        %427 = vmatmul.f32.gmra.mxu0 %v368
        %v428 = vpop.f32.mrf.mxu0
        %v429 = vadd.f32 %v394, %v428
        %430 = vmatmul.f32.gmra.mxu0 %v369
        %v431 = vpop.f32.mrf.mxu0
        %v432 = vadd.f32 %v394, %v431
        %433 = vmatmul.f32.gmra.mxu0 %v370
        %v434 = vpop.f32.mrf.mxu0
        %v435 = vadd.f32 %v394, %v434
        %436 = vmatmul.f32.gmra.mxu0 %v371
        %v437 = vpop.f32.mrf.mxu0
        %v438 = vadd.f32 %v394, %v437
        %439 = vmatmul.f32.gmra.mxu0 %v372
        %v440 = vpop.f32.mrf.mxu0
        %v441 = vadd.f32 %v394, %v440
        %442 = vmatmul.f32.gmra.mxu0 %v373
        %v443 = vpop.f32.mrf.mxu0
        %v444 = vadd.f32 %v394, %v443
        %445 = vmatmul.f32.gmra.mxu0 %v374
        %v446 = vpop.f32.mrf.mxu0
        %v447 = vadd.f32 %v394, %v446
        %448 = vmatmul.f32.gmra.mxu0 %v375
        %v449 = vpop.f32.mrf.mxu0
        %v450 = vadd.f32 %v394, %v449
        %451 = vdwg.mxu0
        %vm452 = vcmask 130048
        %453 = vst.msk [vmem:[%s226] sm:$0xff] %vm452, %v414
        %454 = vst.msk [vmem:[%s226 + $0x8] sm:$0xff] %vm452, %v417
        %455 = vst.msk [vmem:[%s226 + $0x10] sm:$0xff] %vm452, %v420
        %456 = vst.msk [vmem:[%s226 + $0x18] sm:$0xff] %vm452, %v423
        %457 = vst.msk [vmem:[%s226 + $0x20] sm:$0xff] %vm452, %v426
        %458 = vst.msk [vmem:[%s226 + $0x28] sm:$0xff] %vm452, %v429
        %459 = vst.msk [vmem:[%s226 + $0x30] sm:$0xff] %vm452, %v432
        %460 = vst.msk [vmem:[%s226 + $0x38] sm:$0xff] %vm452, %v435
        %461 = vst.msk [vmem:[%s226 + $0x40] sm:$0xff] %vm452, %v438
        %462 = vst.msk [vmem:[%s226 + $0x48] sm:$0xff] %vm452, %v441
        %463 = vst.msk [vmem:[%s226 + $0x50] sm:$0xff] %vm452, %v444
        %464 = vst.msk [vmem:[%s226 + $0x58] sm:$0xff] %vm452, %v447
        %465 = vst.msk [vmem:[%s226 + $0x60] sm:$0xff] %vm452, %v450
        %s466 = sand.u32 %s134, 1
        %s467 = sand.u32 %s134, 1
        %s468 = smul.addr %s467, 104
        %s469 = scalar_lea.vmem [#allocation2], %s468
        // Predicated region
        $region41: #{tpu_custom_call.1} parent=39 // pred_check
          %p470 = pneg %p144
        $region42: #{tpu_custom_call.1} parent=39 // pred_check_branch
          %472 = sbr.rel (%p470) target = $region44
        $region43: #{tpu_custom_call.1} parent=39 // pred_region
          %s473 = smul.u32 13, %s16
          %s474 = ssub.s32 25, %s473
          %p475 = scmp.lt.s32.totalorder %s474, 13
          %s476 = scalar_select %p475, %s474, 13
          %s477 = smul.u32 8, %s476
          %p478 = scmp.ne.s32.totalorder 0, %s477
          %s479 = smul.addr %s473, 8
          %s480 = scalar_lea.vmem %s5, %s479
          // Predicated region
          $region45: #{tpu_custom_call.1} parent=43 // pred_check
            %p481 = pneg %p478
          $region46: #{tpu_custom_call.1} parent=43 // pred_check_branch
            %483 = sbr.rel (%p481) target = $region48
          $region47: #{tpu_custom_call.1} parent=43 // pred_region
            // Predicated region
            $region49: #{tpu_custom_call.1} parent=47 // pred_check
              _
            $region50: #{tpu_custom_call.1} parent=47 // pred_check_branch
              %485 = sbr.rel (0) target = $region52
            $region51: #{tpu_custom_call.1} parent=47 // pred_region
              // Predicated region
              $region71: #{tpu_custom_call.1} parent=51 // pred_check
                _
              $region72: #{tpu_custom_call.1} parent=51 // pred_check_branch
                %560 = sbr.rel (0) target = $region74
              $region73: #{tpu_custom_call.1} parent=51 // pred_region
                %s561 = sdiv.u32.pop %s476, 13
                %s562 = srem.u32.pop %s476, 13
                // While loop
                $region75: #{tpu_custom_call.1} parent=73 // loop_pre_header
                  _
                $region76: #{tpu_custom_call.1} parent=73 // loop_header
                  %s564 = sphi 0, %s566
                  %p565 = scmp.ge.s32.totalorder %s564, %s561
                  %s569 = sphi 0, %s600
                  %s570 = sphi %s469, %s603
                  %s571 = sphi %s480, %s604
                $region77: #{tpu_custom_call.1} parent=73 // loop_header_branch
                  %568 = sbr.rel (%p565) target = $region81
                $region78: #{tpu_custom_call.1} parent=73 // loop_body
                  %v572 = vld [vmem:[%s570] sm:$0xff]
                  %573 = vst [vmem:[%s571] sm:$0xff] %v572
                  %v574 = vld [vmem:[%s570 + $0x8] sm:$0xff]
                  %575 = vst [vmem:[%s571 + $0x8] sm:$0xff] %v574
                  %v576 = vld [vmem:[%s570 + $0x10] sm:$0xff]
                  %577 = vst [vmem:[%s571 + $0x10] sm:$0xff] %v576
                  %v578 = vld [vmem:[%s570 + $0x18] sm:$0xff]
                  %579 = vst [vmem:[%s571 + $0x18] sm:$0xff] %v578
                  %v580 = vld [vmem:[%s570 + $0x20] sm:$0xff]
                  %581 = vst [vmem:[%s571 + $0x20] sm:$0xff] %v580
                  %v582 = vld [vmem:[%s570 + $0x28] sm:$0xff]
                  %583 = vst [vmem:[%s571 + $0x28] sm:$0xff] %v582
                  %v584 = vld [vmem:[%s570 + $0x30] sm:$0xff]
                  %585 = vst [vmem:[%s571 + $0x30] sm:$0xff] %v584
                  %v586 = vld [vmem:[%s570 + $0x38] sm:$0xff]
                  %587 = vst [vmem:[%s571 + $0x38] sm:$0xff] %v586
                  %v588 = vld [vmem:[%s570 + $0x40] sm:$0xff]
                  %589 = vst [vmem:[%s571 + $0x40] sm:$0xff] %v588
                  %v590 = vld [vmem:[%s570 + $0x48] sm:$0xff]
                  %591 = vst [vmem:[%s571 + $0x48] sm:$0xff] %v590
                  %v592 = vld [vmem:[%s570 + $0x50] sm:$0xff]
                  %593 = vst [vmem:[%s571 + $0x50] sm:$0xff] %v592
                  %v594 = vld [vmem:[%s570 + $0x58] sm:$0xff]
                  %595 = vst [vmem:[%s571 + $0x58] sm:$0xff] %v594
                  %v596 = vld [vmem:[%s570 + $0x60] sm:$0xff]
                  %597 = vst [vmem:[%s571 + $0x60] sm:$0xff] %v596
                  %s598 = sadd.s32 1, %s569
                  %p599 = scmp.ge.s32.totalorder %s598, %s561
                  %s600 = scalar_select %p599, 0, %s598
                  %s601 = smul.u32 %s600, 104
                  %s602 = smul.u32 %s600, 104
                  %s603 = scalar_lea.vmem %s469, %s601 [#allocation2]
                  %s604 = scalar_lea.vmem %s480, %s602
                $region79: #{tpu_custom_call.1} parent=73 // loop_footer
                  %s566 = sadd.s32 %s564, 1
                $region80: #{tpu_custom_call.1} parent=73 // loop_footer_branch
                  %563 = sbr.rel target = $region76
                $region81: #{tpu_custom_call.1} parent=73 // loop_exit
                  _
                %s605 = sdiv.u32.pop %s476, 13
                %s606 = srem.u32.pop %s476, 13
                %s607 = smul.u32 %s605, 13
                %s608 = smul.u32 8, %s607
                %s609 = scalar_lea.vmem %s469, %s608 [#allocation2]
                %s610 = smul.u32 8, %s607
                %s611 = scalar_lea.vmem %s480, %s610
                // While loop
                $region82: #{tpu_custom_call.1} parent=73 // loop_pre_header
                  _
                $region83: #{tpu_custom_call.1} parent=73 // loop_header
                  %s613 = sphi 0, %s615
                  %p614 = scmp.ge.s32.totalorder %s613, %s606
                  %s618 = sphi 0, %s625
                  %s619 = sphi %s609, %s628
                  %s620 = sphi %s611, %s629
                $region84: #{tpu_custom_call.1} parent=73 // loop_header_branch
                  %617 = sbr.rel (%p614) target = $region88
                $region85: #{tpu_custom_call.1} parent=73 // loop_body
                  %v621 = vld [vmem:[%s619] sm:$0xff]
                  %622 = vst [vmem:[%s620] sm:$0xff] %v621
                  %s623 = sadd.s32 1, %s618
                  %p624 = scmp.ge.s32.totalorder %s623, %s606
                  %s625 = scalar_select %p624, 0, %s623
                  %s626 = smul.u32 %s625, 8
                  %s627 = smul.u32 %s625, 8
                  %s628 = scalar_lea.vmem %s609, %s626 [#allocation2]
                  %s629 = scalar_lea.vmem %s611, %s627
                $region86: #{tpu_custom_call.1} parent=73 // loop_footer
                  %s615 = sadd.s32 %s613, 1
                $region87: #{tpu_custom_call.1} parent=73 // loop_footer_branch
                  %612 = sbr.rel target = $region83
                $region88: #{tpu_custom_call.1} parent=73 // loop_exit
                  _
              $region74: #{tpu_custom_call.1} parent=51 // pred_fallthru
                _
              // Predicated region
              $region89: #{tpu_custom_call.1} parent=51 // pred_check
                _
              $region90: #{tpu_custom_call.1} parent=51 // pred_check_branch
                %631 = sbr.rel target = $region92
              $region91: #{tpu_custom_call.1} parent=51 // pred_region
                _
              $region92: #{tpu_custom_call.1} parent=51 // pred_fallthru
                _
            $region52: #{tpu_custom_call.1} parent=47 // pred_fallthru
              _
            // Predicated region
            $region53: #{tpu_custom_call.1} parent=47 // pred_check
              _
            $region54: #{tpu_custom_call.1} parent=47 // pred_check_branch
              %487 = sbr.rel target = $region56
            $region55: #{tpu_custom_call.1} parent=47 // pred_region
              %s489 = ssub.s32 256, 1
              %s490 = sdiv.u32.pop %s476, 13
              %s491 = srem.u32.pop %s476, 13
              // While loop
              $region57: #{tpu_custom_call.1} parent=55 // loop_pre_header
                _
              $region58: #{tpu_custom_call.1} parent=55 // loop_header
                %s493 = sphi 0, %s495
                %p494 = scmp.ge.s32.totalorder %s493, %s490
                %s498 = sphi 0, %s529
                %s499 = sphi %s469, %s532
                %s500 = sphi %s480, %s533
              $region59: #{tpu_custom_call.1} parent=55 // loop_header_branch
                %497 = sbr.rel (%p494) target = $region63
              $region60: #{tpu_custom_call.1} parent=55 // loop_body
                %v501 = vld [vmem:[%s499] sm:%s489]
                %502 = vst [vmem:[%s500] sm:%s489] %v501
                %v503 = vld [vmem:[%s499 + $0x8] sm:%s489]
                %504 = vst [vmem:[%s500 + $0x8] sm:%s489] %v503
                %v505 = vld [vmem:[%s499 + $0x10] sm:%s489]
                %506 = vst [vmem:[%s500 + $0x10] sm:%s489] %v505
                %v507 = vld [vmem:[%s499 + $0x18] sm:%s489]
                %508 = vst [vmem:[%s500 + $0x18] sm:%s489] %v507
                %v509 = vld [vmem:[%s499 + $0x20] sm:%s489]
                %510 = vst [vmem:[%s500 + $0x20] sm:%s489] %v509
                %v511 = vld [vmem:[%s499 + $0x28] sm:%s489]
                %512 = vst [vmem:[%s500 + $0x28] sm:%s489] %v511
                %v513 = vld [vmem:[%s499 + $0x30] sm:%s489]
                %514 = vst [vmem:[%s500 + $0x30] sm:%s489] %v513
                %v515 = vld [vmem:[%s499 + $0x38] sm:%s489]
                %516 = vst [vmem:[%s500 + $0x38] sm:%s489] %v515
                %v517 = vld [vmem:[%s499 + $0x40] sm:%s489]
                %518 = vst [vmem:[%s500 + $0x40] sm:%s489] %v517
                %v519 = vld [vmem:[%s499 + $0x48] sm:%s489]
                %520 = vst [vmem:[%s500 + $0x48] sm:%s489] %v519
                %v521 = vld [vmem:[%s499 + $0x50] sm:%s489]
                %522 = vst [vmem:[%s500 + $0x50] sm:%s489] %v521
                %v523 = vld [vmem:[%s499 + $0x58] sm:%s489]
                %524 = vst [vmem:[%s500 + $0x58] sm:%s489] %v523
                %v525 = vld [vmem:[%s499 + $0x60] sm:%s489]
                %526 = vst [vmem:[%s500 + $0x60] sm:%s489] %v525
                %s527 = sadd.s32 1, %s498
                %p528 = scmp.ge.s32.totalorder %s527, %s490
                %s529 = scalar_select %p528, 0, %s527
                %s530 = smul.u32 %s529, 104
                %s531 = smul.u32 %s529, 104
                %s532 = scalar_lea.vmem %s469, %s530 [#allocation2]
                %s533 = scalar_lea.vmem %s480, %s531
              $region61: #{tpu_custom_call.1} parent=55 // loop_footer
                %s495 = sadd.s32 %s493, 1
              $region62: #{tpu_custom_call.1} parent=55 // loop_footer_branch
                %492 = sbr.rel target = $region58
              $region63: #{tpu_custom_call.1} parent=55 // loop_exit
                _
              %s534 = sdiv.u32.pop %s476, 13
              %s535 = srem.u32.pop %s476, 13
              %s536 = smul.u32 %s534, 13
              %s537 = smul.u32 8, %s536
              %s538 = scalar_lea.vmem %s469, %s537 [#allocation2]
              %s539 = smul.u32 8, %s536
              %s540 = scalar_lea.vmem %s480, %s539
              // While loop
              $region64: #{tpu_custom_call.1} parent=55 // loop_pre_header
                _
              $region65: #{tpu_custom_call.1} parent=55 // loop_header
                %s542 = sphi 0, %s544
                %p543 = scmp.ge.s32.totalorder %s542, %s535
                %s547 = sphi 0, %s554
                %s548 = sphi %s538, %s557
                %s549 = sphi %s540, %s558
              $region66: #{tpu_custom_call.1} parent=55 // loop_header_branch
                %546 = sbr.rel (%p543) target = $region70
              $region67: #{tpu_custom_call.1} parent=55 // loop_body
                %v550 = vld [vmem:[%s548] sm:%s489]
                %551 = vst [vmem:[%s549] sm:%s489] %v550
                %s552 = sadd.s32 1, %s547
                %p553 = scmp.ge.s32.totalorder %s552, %s535
                %s554 = scalar_select %p553, 0, %s552
                %s555 = smul.u32 %s554, 8
                %s556 = smul.u32 %s554, 8
                %s557 = scalar_lea.vmem %s538, %s555 [#allocation2]
                %s558 = scalar_lea.vmem %s540, %s556
              $region68: #{tpu_custom_call.1} parent=55 // loop_footer
                %s544 = sadd.s32 %s542, 1
              $region69: #{tpu_custom_call.1} parent=55 // loop_footer_branch
                %541 = sbr.rel target = $region65
              $region70: #{tpu_custom_call.1} parent=55 // loop_exit
                _
            $region56: #{tpu_custom_call.1} parent=47 // pred_fallthru
              _
          $region48: #{tpu_custom_call.1} parent=43 // pred_fallthru
            _
          %632 = vnop
        $region44: #{tpu_custom_call.1} parent=39 // pred_fallthru
          _
      $region40: #{tpu_custom_call.1} parent=5 // pred_fallthru
        _
      %p633 = scmp.le.s32.totalorder 2, %s11
      // Predicated region
      $region93: #{tpu_custom_call.1} parent=5 // pred_check
        %p634 = pneg %p633
      $region94: #{tpu_custom_call.1} parent=5 // pred_check_branch
        %636 = sbr.rel (%p634) target = $region96
      $region95: #{tpu_custom_call.1} parent=5 // pred_region
        %s637 = ssub.s32 %s11, 2
        // Predicated region
        $region97: #{tpu_custom_call.1} parent=95 // pred_check
          %p638 = pneg %p150
        $region98: #{tpu_custom_call.1} parent=95 // pred_check_branch
          %640 = sbr.rel (%p638) target = $region100
        $region99: #{tpu_custom_call.1} parent=95 // pred_region
          %s641 = sand.u32 %s135, 1
          %s642 = sand.u32 %s135, 1
          %s643 = smul.addr %s642, 104
          %s644 = scalar_lea.vmem [#allocation2], %s643
        $region100: #{tpu_custom_call.1} parent=95 // pred_fallthru
          _
      $region96: #{tpu_custom_call.1} parent=5 // pred_fallthru
        _
    $region6: #{tpu_custom_call.1} parent=1 // loop_footer
      %s15 = sadd.s32 1, %s11
    $region7: #{tpu_custom_call.1} parent=1 // loop_footer_branch
      %10 = sbr.rel target = $region3
    $region8: #{tpu_custom_call.1} parent=1 // loop_exit
      _

</llo_original>
